<compile_context>
chip_gen: v7x
topology: tpu7x:2x2x1
jax: 0.10.0
libtpu: 0.0.40
codegen_flags: <defaults>
</compile_context>

<pallas_src>
import functools

import jax
import jax.numpy as jnp
from jax import lax
from jax.experimental import pallas as pl
from jax.experimental.pallas import tpu as pltpu

PADDING_IDX = -1


def _round_up(x, m):
    return (x + m - 1) // m * m


def _embed_kernel(num_tokens, ids_ref, table_ref, out_ref):
    """One row-tile of the fused embedding lookup.

    ids_ref:   (tm, 1 + N) int32 -- col 0: token id, cols 1..N: speaker ids.
    table_ref: (K_pad, D_pad) f32 -- block-diagonal fused embedding table.
    out_ref:   (tm, D_pad) f32   -- [token_emb | speaker_emb | zero pad], lane dense.
    """
    ids = ids_ref[...]                                            # (tm, 1+N)
    tm = ids.shape[0]
    n_spk = ids.shape[1] - 1
    k = table_ref.shape[0]

    iota_k = lax.broadcasted_iota(jnp.int32, (tm, k), 1)

    # Token one-hot: iota >= 0, so a padding id (-1) never matches -> all-zero row.
    tok = ids[:, 0:1]                                             # (tm, 1)
    hot = (iota_k == tok).astype(jnp.float32)

    # Speaker multi-hot, shifted into rows [V, V+E).  A slot contributes only if its
    # id is valid AND the bag itself is valid (first speaker id not padding), which
    # reproduces the mask[:, :, 0] EmbeddingBag semantics of the PyTorch module.
    bag_valid = ids[:, 1:2] >= 0                                  # (tm, 1) bool
    for n in range(n_spk):                                        # N is small & static
        sid = ids[:, n + 1:n + 2]                                 # (tm, 1)
        shifted = jnp.where((sid >= 0) & bag_valid, sid + num_tokens, PADDING_IDX)
        hot = hot + (iota_k == shifted).astype(jnp.float32)

    # One fused MXU matmul -> direct lane-dense store (no in-kernel concatenate).
    out_ref[...] = jnp.dot(hot, table_ref[...], preferred_element_type=jnp.float32)


def utterance_embedder(padded_batch, token_table, speaker_table, *, tm=256):
    """padded_batch: (B, S, C) int; returns (B, S, D_tok + D_spk) float32."""
    B, S, C = padded_batch.shape
    n_spk = C - 2
    V, D_tok = token_table.shape
    E, D_spk = speaker_table.shape
    D = D_tok + D_spk
    M = B * S

    # Combined id matrix (token id first, then speaker ids): a single DMA stream.
    ids = jnp.concatenate(
        [padded_batch[:, :, 0:1], padded_batch[:, :, 2:]], axis=2
    ).reshape(M, 1 + n_spk).astype(jnp.int32)

    # Row tile: large enough to pipeline, never larger than the (padded) row count.
    tm = min(tm, _round_up(M, 8))
    M_pad = _round_up(M, tm)
    if M_pad != M:
        ids = jnp.pad(ids, ((0, M_pad - M), (0, 0)), constant_values=PADDING_IDX)

    # Block-diagonal fused table, lane-padded so every kernel store is unmasked.
    K_pad = _round_up(V + E, 8)
    D_pad = _round_up(D, 128)
    fused_table = jnp.zeros((K_pad, D_pad), jnp.float32)
    fused_table = fused_table.at[:V, :D_tok].set(token_table.astype(jnp.float32))
    fused_table = fused_table.at[V:V + E, D_tok:D].set(
        speaker_table.astype(jnp.float32))

    grid = (M_pad // tm,)

    # TODO(synk): for production-scale vocabularies (V * D_tok * 4 bytes comparable to
    # VMEM, especially v7x's 64 MiB), replace the one-hot matmul with a scalar-prefetch
    # row-gather (pl.Element index_map) and single-buffer the table (pl.Buffered(1)).
    out = pl.pallas_call(
        functools.partial(_embed_kernel, V),
        out_shape=jax.ShapeDtypeStruct((M_pad, D_pad), jnp.float32),
        grid_spec=pl.GridSpec(
            grid=grid,
            in_specs=[
                pl.BlockSpec((tm, 1 + n_spk), lambda i: (i, 0)),   # ids: tiled over M
                pl.BlockSpec((K_pad, D_pad), lambda i: (0, 0)),    # fused table: resident
            ],
            out_specs=pl.BlockSpec((tm, D_pad), lambda i: (i, 0)),
        ),
        compiler_params=pltpu.CompilerParams(
            dimension_semantics=("parallel",),
            vmem_limit_bytes=48 * 1024 * 1024,
        ),
        cost_estimate=pl.CostEstimate(
            flops=2 * M_pad * K_pad * D_pad,
            transcendentals=0,
            bytes_accessed=int(ids.size * 4 + K_pad * D_pad * 4 + M_pad * D_pad * 4),
        ),
    )(ids, fused_table)

    return out[:M, :D].reshape(B, S, D)


def _reference(padded_batch, token_table, speaker_table):
    """Pure-JAX reference of the PyTorch forward (well-formed padding assumed)."""
    tok = padded_batch[:, :, 0]
    spk = padded_batch[:, :, 2:]
    tok_mask = tok != PADDING_IDX
    tok_emb = jnp.where(tok_mask[..., None],
                        token_table[jnp.where(tok_mask, tok, 0)], 0.0)
    spk_mask = spk != PADDING_IDX
    spk_gather = jnp.where(spk_mask[..., None],
                           speaker_table[jnp.where(spk_mask, spk, 0)], 0.0)
    spk_emb = spk_gather.sum(axis=2)
    spk_emb = jnp.where((spk[:, :, 0] != PADDING_IDX)[..., None], spk_emb, 0.0)
    return jnp.concatenate([tok_emb, spk_emb], axis=2).astype(jnp.float32)


if __name__ == "__main__":
    key = jax.random.PRNGKey(0)
    k_tok, k_spk, k_ids, k_sids = jax.random.split(key, 4)

    B, S = 2, 8
    V, D_tok = 32, 32        # args.vocabulary_size, args.token_emb
    E, D_spk = 8, 16         # args.num_entities,    args.speaker_emb
    N_spk = 3
    C = 2 + N_spk

    token_table = jax.random.normal(k_tok, (V, D_tok), dtype=jnp.float32)
    speaker_table = jax.random.normal(k_spk, (E, D_spk), dtype=jnp.float32)

    # Build a padded batch: last 2 positions of each sequence are padding (-1),
    # and the last speaker slot of every valid position is padding (ragged bags).
    tok_ids = jax.random.randint(k_ids, (B, S), 0, V, dtype=jnp.int32)
    spk_ids = jax.random.randint(k_sids, (B, S, N_spk), 0, E, dtype=jnp.int32)
    col1 = jnp.zeros((B, S, 1), dtype=jnp.int32)     # unused column
    seq_pos = jnp.arange(S)[None, :]
    valid = seq_pos < (S - 2)                        # (B, S) valid mask
    tok_ids = jnp.where(valid, tok_ids, PADDING_IDX)
    spk_ids = spk_ids.at[:, :, -1].set(PADDING_IDX)  # ragged bag sizes
    spk_ids = jnp.where(valid[:, :, None], spk_ids, PADDING_IDX)
    padded_batch = jnp.concatenate(
        [tok_ids[:, :, None], col1, spk_ids], axis=2).astype(jnp.int32)

    out = utterance_embedder(padded_batch, token_table, speaker_table)
    out = jax.block_until_ready(out)

    ref = _reference(padded_batch, token_table, speaker_table)
    assert out.shape == (B, S, D_tok + D_spk)
    assert jnp.allclose(out, ref, atol=1e-5, rtol=1e-5)

    print("KERNEL_OK")
</pallas_src>

<mosaic_0001>
module attributes {stable_mosaic.version = 11 : i64} {
  func.func @_embed_kernel(%arg0: i32, %arg1: memref<16x4xi32, #tpu.memory_space<vmem>>, %arg2: memref<40x128xf32, #tpu.memory_space<vmem>>, %arg3: memref<16x128xf32, #tpu.memory_space<vmem>>) attributes {dimension_semantics = [#tpu.dimension_semantics<parallel>], iteration_bounds = array<i64: 1>, scalar_prefetch = 0 : i64, scratch_operands = 0 : i64, tpu.core_type = #tpu.core_type<tc>, window_params = [{transform_indices = @transform_0, window_bounds = array<i64: 16, 4>}, {pipeline_mode = #tpu.pipeline_mode<synchronous>, transform_indices = @transform_1, window_bounds = array<i64: 40, 128>}, {transform_indices = @transform_2, window_bounds = array<i64: 16, 128>}]} {
    %c0 = arith.constant 0 : index
    %c0_0 = arith.constant 0 : index
    %0 = vector.load %arg1[%c0, %c0_0] : memref<16x4xi32, #tpu.memory_space<vmem>>, vector<16x4xi32>
    %1 = tpu.iota {dimensions = array<i32: 1>} : vector<16x40xi32>
    %2 = vector.extract_strided_slice %0 {offsets = [0, 0], sizes = [16, 1], strides = [1, 1]} : vector<16x4xi32> to vector<16x1xi32>
    %3 = vector.broadcast %2 : vector<16x1xi32> to vector<16x40xi32>
    %4 = arith.cmpi eq, %1, %3 : vector<16x40xi32>
    %5 = arith.extui %4 : vector<16x40xi1> to vector<16x40xi32>
    %6 = arith.sitofp %5 : vector<16x40xi32> to vector<16x40xf32>
    %7 = vector.extract_strided_slice %0 {offsets = [0, 1], sizes = [16, 1], strides = [1, 1]} : vector<16x4xi32> to vector<16x1xi32>
    %c0_i32 = arith.constant 0 : i32
    %8 = vector.broadcast %c0_i32 : i32 to vector<16x1xi32>
    %9 = arith.cmpi sge, %7, %8 : vector<16x1xi32>
    %10 = vector.extract_strided_slice %0 {offsets = [0, 1], sizes = [16, 1], strides = [1, 1]} : vector<16x4xi32> to vector<16x1xi32>
    %c0_i32_1 = arith.constant 0 : i32
    %11 = vector.broadcast %c0_i32_1 : i32 to vector<16x1xi32>
    %12 = arith.cmpi sge, %10, %11 : vector<16x1xi32>
    %13 = arith.andi %12, %9 : vector<16x1xi1>
    %c32_i32 = arith.constant 32 : i32
    %14 = vector.broadcast %c32_i32 : i32 to vector<16x1xi32>
    %15 = arith.addi %10, %14 : vector<16x1xi32>
    %c-1_i32 = arith.constant -1 : i32
    %16 = vector.broadcast %c-1_i32 : i32 to vector<16x1xi32>
    %17 = arith.select %13, %15, %16 : vector<16x1xi1>, vector<16x1xi32>
    %18 = vector.broadcast %17 : vector<16x1xi32> to vector<16x40xi32>
    %19 = arith.cmpi eq, %1, %18 : vector<16x40xi32>
    %20 = arith.extui %19 : vector<16x40xi1> to vector<16x40xi32>
    %21 = arith.sitofp %20 : vector<16x40xi32> to vector<16x40xf32>
    %22 = arith.addf %6, %21 : vector<16x40xf32>
    %23 = vector.extract_strided_slice %0 {offsets = [0, 2], sizes = [16, 1], strides = [1, 1]} : vector<16x4xi32> to vector<16x1xi32>
    %c0_i32_2 = arith.constant 0 : i32
    %24 = vector.broadcast %c0_i32_2 : i32 to vector<16x1xi32>
    %25 = arith.cmpi sge, %23, %24 : vector<16x1xi32>
    %26 = arith.andi %25, %9 : vector<16x1xi1>
    %c32_i32_3 = arith.constant 32 : i32
    %27 = vector.broadcast %c32_i32_3 : i32 to vector<16x1xi32>
    %28 = arith.addi %23, %27 : vector<16x1xi32>
    %c-1_i32_4 = arith.constant -1 : i32
    %29 = vector.broadcast %c-1_i32_4 : i32 to vector<16x1xi32>
    %30 = arith.select %26, %28, %29 : vector<16x1xi1>, vector<16x1xi32>
    %31 = vector.broadcast %30 : vector<16x1xi32> to vector<16x40xi32>
    %32 = arith.cmpi eq, %1, %31 : vector<16x40xi32>
    %33 = arith.extui %32 : vector<16x40xi1> to vector<16x40xi32>
    %34 = arith.sitofp %33 : vector<16x40xi32> to vector<16x40xf32>
    %35 = arith.addf %22, %34 : vector<16x40xf32>
    %36 = vector.extract_strided_slice %0 {offsets = [0, 3], sizes = [16, 1], strides = [1, 1]} : vector<16x4xi32> to vector<16x1xi32>
    %c0_i32_5 = arith.constant 0 : i32
    %37 = vector.broadcast %c0_i32_5 : i32 to vector<16x1xi32>
    %38 = arith.cmpi sge, %36, %37 : vector<16x1xi32>
    %39 = arith.andi %38, %9 : vector<16x1xi1>
    %c32_i32_6 = arith.constant 32 : i32
    %40 = vector.broadcast %c32_i32_6 : i32 to vector<16x1xi32>
    %41 = arith.addi %36, %40 : vector<16x1xi32>
    %c-1_i32_7 = arith.constant -1 : i32
    %42 = vector.broadcast %c-1_i32_7 : i32 to vector<16x1xi32>
    %43 = arith.select %39, %41, %42 : vector<16x1xi1>, vector<16x1xi32>
    %44 = vector.broadcast %43 : vector<16x1xi32> to vector<16x40xi32>
    %45 = arith.cmpi eq, %1, %44 : vector<16x40xi32>
    %46 = arith.extui %45 : vector<16x40xi1> to vector<16x40xi32>
    %47 = arith.sitofp %46 : vector<16x40xi32> to vector<16x40xf32>
    %48 = arith.addf %35, %47 : vector<16x40xf32>
    %c0_8 = arith.constant 0 : index
    %c0_9 = arith.constant 0 : index
    %49 = vector.load %arg2[%c0_8, %c0_9] : memref<40x128xf32, #tpu.memory_space<vmem>>, vector<40x128xf32>
    %cst = arith.constant dense<0.000000e+00> : vector<16x128xf32>
    %50 = tpu.matmul %48, %49, %cst {dimension_numbers = #tpu.dot_dimension_numbers<[1], [0], [0], [1], [0, 0, 1, 1], [], []>} : vector<16x40xf32>, vector<40x128xf32>, vector<16x128xf32> -> vector<16x128xf32>
    %c0_10 = arith.constant 0 : index
    %c0_11 = arith.constant 0 : index
    %51 = vector.load %arg3[%c0_10, %c0_11] : memref<16x128xf32, #tpu.memory_space<vmem>>, vector<16x128xf32>
    tpu.vector_store %arg3[%c0_10, %c0_11], %50 {strides = array<i32>} : memref<16x128xf32, #tpu.memory_space<vmem>>, vector<16x128xf32>,
    return
  }
  func.func @transform_0(%arg0: i32) -> (i32, i32) {
    %c0_i32 = arith.constant 0 : i32
    %c0_i32_0 = arith.constant 0 : i32
    return %arg0, %c0_i32 : i32, i32
  }
  func.func @transform_1(%arg0: i32) -> (i32, i32) {
    %c0_i32 = arith.constant 0 : i32
    %c0_i32_0 = arith.constant 0 : i32
    %c0_i32_1 = arith.constant 0 : i32
    return %c0_i32, %c0_i32_0 : i32, i32
  }
  func.func @transform_2(%arg0: i32) -> (i32, i32) {
    %c0_i32 = arith.constant 0 : i32
    %c0_i32_0 = arith.constant 0 : i32
    return %arg0, %c0_i32 : i32, i32
  }
}

</mosaic_0001>

<llo_original>
// kernel: tpu_custom_call.1
$region0: #{tpu_custom_call.1}
  #allocation0 [shape = 'u32[]', space=smem, size = 0x4, offset = 0x4, fixed_abs, tag = 'smem constant byte address 0x4 - core index']
  #allocation1 [shape = 'u32[144,128]{1,0:T(1,128)}', space=vmem, size = 0x12000, scoped, tag = 'internal scratch']
  %s0 = inlined_call_operand.vmem [shape: s32[16,4], index: 0, kind: input, shape index: {}]
  %s1 = inlined_call_operand.hbm [shape: f32[40,128], index: 1, kind: input, shape index: {}]
  %s2 = inlined_call_operand.hbm [shape: f32[16,128], index: 2, kind: output, shape index: {}]
  %s3 = sld [smem:[#allocation0]]
  $region22: #{tpu_custom_call.1} parent=0
    _
  %s5 = ssub.s32 1, %s3
  %s6 = scalar_select 0, %s5, %s3
  $region1: #{tpu_custom_call.1} parent=0
    #allocation2 [shape = 'u8[20480]{0}', space=vmem, size = 0x5000, scoped, tag = 'input window, operand 1, single buffered']
    #allocation3 [shape = 's32[1]{0}', space=sflag, size = 0x4, scoped, tag = 'scoped memory for tpu_custom_call.1']
    #allocation4 [shape = 's32[1]{0}', space=sflag, size = 0x4, scoped, tag = 'scoped memory for tpu_custom_call.1']
    #allocation5 [shape = 'u8[8192]{0}', space=vmem, size = 0x2000, scoped, tag = 'output window, operand 0, single buffered']
    %7 = vsyncpa [#allocation3], 0
    %8 = vsyncpa [#allocation4], 0
    // Predicated region
    $region2: #{tpu_custom_call.1} parent=1 // pred_check
      _
    $region3: #{tpu_custom_call.1} parent=1 // pred_check_branch
      %10 = sbr.rel (0) target = $region5
    $region4: #{tpu_custom_call.1} parent=1 // pred_region
      _
    $region5: #{tpu_custom_call.1} parent=1 // pred_fallthru
      _
    // Predicated region
    $region6: #{tpu_custom_call.1} parent=1 // pred_check
      _
    $region7: #{tpu_custom_call.1} parent=1 // pred_check_branch
      %12 = sbr.rel (0) target = $region9
    $region8: #{tpu_custom_call.1} parent=1 // pred_region
      %s14 = ssub.s32 640, 640
      %15 = vsyncadd [#allocation3], %s14
      %s16 = sshll.u32 [#allocation2], 4
      %s17 = int_to_ptr.vmem [resolvable:$true] %s16
      %22 = dma.hbm_to_vmem [thread:$0]  %s1, 640, %s17, [#allocation3], 128, 128, 8
    $region9: #{tpu_custom_call.1} parent=1 // pred_fallthru
      _
    // Predicated region
    $region10: #{tpu_custom_call.1} parent=1 // pred_check
      _
    $region11: #{tpu_custom_call.1} parent=1 // pred_check_branch
      %24 = sbr.rel (0) target = $region13
    $region12: #{tpu_custom_call.1} parent=1 // pred_region
      %25 = dma.done [#allocation3], 640
    $region13: #{tpu_custom_call.1} parent=1 // pred_fallthru
      _
    %v26 = vld [vmem:[%s0] sm:$0xff]
    %v27 = vld [vmem:[%s0 + $0x8] sm:$0xff]
    %v28 = vlaneseq
    %v29 = vand.u32 %v28, 127
    %30 = vset.pattern.permute.xlu0 0
    %31 = vperm.xlu0 %30, %v26
    %v32 = vpop.permute.xlu0 %31
    %33 = vset.pattern.permute.xlu0 0
    %34 = vperm.xlu0 %33, %v27
    %v35 = vpop.permute.xlu0 %34
    %vm36 = vcmp.eq.s32.totalorder %v29, %v32
    %vm37 = vcmp.eq.s32.totalorder %v29, %v35
    %v38 = vsel %vm36, 1, 0
    %v39 = vsel %vm37, 1, 0
    %v40 = vcvt.s32.f32 %v38
    %v41 = vcvt.s32.f32 %v39
    %vm42 = vcmp.ge.s32.totalorder %v26, 0
    %vm43 = vcmp.ge.s32.totalorder %v27, 0
    %v44 = vadd.s32 %v26, 32
    %v45 = vadd.s32 %v27, 32
    %v46 = vsel %vm42, %v44, 4294967295
    %v47 = vsel %vm43, %v45, 4294967295
    %48 = vset.pattern.permute.xlu0 1
    %49 = vperm.xlu0 %48, %v46
    %v50 = vpop.permute.xlu0 %49
    %51 = vset.pattern.permute.xlu0 1
    %52 = vperm.xlu0 %51, %v47
    %v53 = vpop.permute.xlu0 %52
    %vm54 = vcmp.eq.s32.totalorder %v29, %v50
    %vm55 = vcmp.eq.s32.totalorder %v29, %v53
    %v56 = vsel %vm54, 1, 0
    %v57 = vsel %vm55, 1, 0
    %v58 = vcvt.s32.f32 %v56
    %v59 = vcvt.s32.f32 %v57
    %v60 = vadd.f32 %v40, %v58
    %v61 = vadd.f32 %v41, %v59
    %v62 = vsel %vm42, 1, 0
    %v63 = vsel %vm43, 1, 0
    %64 = vrot.lane.b32.xlu0 %v62, 1
    %v65 = vpop.permute.xlu0 %64
    %66 = vrot.lane.b32.xlu0 %v63, 1
    %v67 = vpop.permute.xlu0 %66
    %vm68 = vcmp.ne.s32.totalorder %v65, 0
    %vm69 = vcmp.ne.s32.totalorder %v67, 0
    %vm70 = vmand %vm42, %vm68
    %vm71 = vmand %vm43, %vm69
    %v72 = vsel %vm70, %v44, 4294967295
    %v73 = vsel %vm71, %v45, 4294967295
    %74 = vset.pattern.permute.xlu0 2
    %75 = vperm.xlu0 %74, %v72
    %v76 = vpop.permute.xlu0 %75
    %77 = vset.pattern.permute.xlu0 2
    %78 = vperm.xlu0 %77, %v73
    %v79 = vpop.permute.xlu0 %78
    %vm80 = vcmp.eq.s32.totalorder %v29, %v76
    %vm81 = vcmp.eq.s32.totalorder %v29, %v79
    %v82 = vsel %vm80, 1, 0
    %v83 = vsel %vm81, 1, 0
    %v84 = vcvt.s32.f32 %v82
    %v85 = vcvt.s32.f32 %v83
    %v86 = vadd.f32 %v60, %v84
    %v87 = vadd.f32 %v61, %v85
    %88 = vrot.lane.b32.xlu0 %v62, 2
    %v89 = vpop.permute.xlu0 %88
    %90 = vrot.lane.b32.xlu0 %v63, 2
    %v91 = vpop.permute.xlu0 %90
    %vm92 = vcmp.ne.s32.totalorder %v89, 0
    %vm93 = vcmp.ne.s32.totalorder %v91, 0
    %vm94 = vmand %vm42, %vm92
    %vm95 = vmand %vm43, %vm93
    %v96 = vsel %vm94, %v44, 4294967295
    %v97 = vsel %vm95, %v45, 4294967295
    %98 = vset.pattern.permute.xlu0 3
    %99 = vperm.xlu0 %98, %v96
    %v100 = vpop.permute.xlu0 %99
    %101 = vset.pattern.permute.xlu0 3
    %102 = vperm.xlu0 %101, %v97
    %v103 = vpop.permute.xlu0 %102
    %vm104 = vcmp.eq.s32.totalorder %v29, %v100
    %vm105 = vcmp.eq.s32.totalorder %v29, %v103
    %v106 = vsel %vm104, 1, 0
    %v107 = vsel %vm105, 1, 0
    %v108 = vcvt.s32.f32 %v106
    %v109 = vcvt.s32.f32 %v107
    %v110 = vadd.f32 %v86, %v108
    %v111 = vadd.f32 %v87, %v109
    %v112 = vld [vmem:[#allocation2] sm:$0xff]
    %v113 = vld [vmem:[#allocation2 + $0x8] sm:$0xff]
    %v114 = vld [vmem:[#allocation2 + $0x10] sm:$0xff]
    %v115 = vld [vmem:[#allocation2 + $0x18] sm:$0xff]
    %v116 = vld [vmem:[#allocation2 + $0x20] sm:$0xff]
    %vm117 = vcmask 326656
    %v119 = vsel %vm117, %v110, 0
    %v122 = vsel %vm117, %v111, 0
    %124 = vmatprep.subr.mxu0 0.0
    %125 = vmatpush1.msra.mxu0 %v112
    %126 = vmatprep.subr.mxu0 0.0
    %127 = vmatpush1.msra.mxu0 %v113
    %128 = vmatprep.subr.mxu0 0.0
    %129 = vmatpush1.msra.mxu0 %v114
    %130 = vmatprep.subr.mxu0 0.0
    %131 = vmatpush1.msra.mxu0 %v115
    %132 = vmatprep.subr.mxu0 0.0
    %133 = vmatpush1.msra.mxu0 %v116
    %134 = vmatprep.subr.mxu0 0.0
    %135 = vmatpush1.msra.mxu0 0.0
    %136 = vmatprep.subr.mxu0 0.0
    %137 = vmatpush1.msra.mxu0 0.0
    %138 = vmatprep.subr.mxu0 0.0
    %139 = vmatpush1.msra.mxu0 0.0
    %140 = vmatprep.subr.mxu0 0.0
    %141 = vmatpush1.msra.mxu0 0.0
    %142 = vmatprep.subr.mxu0 0.0
    %143 = vmatpush1.msra.mxu0 0.0
    %144 = vmatprep.subr.mxu0 0.0
    %145 = vmatpush1.msra.mxu0 0.0
    %146 = vmatprep.subr.mxu0 0.0
    %147 = vmatpush1.msra.mxu0 0.0
    %148 = vmatprep.subr.mxu0 0.0
    %149 = vmatpush1.msra.mxu0 0.0
    %150 = vmatprep.subr.mxu0 0.0
    %151 = vmatpush1.msra.mxu0 0.0
    %152 = vmatprep.subr.mxu0 0.0
    %153 = vmatpush1.msra.mxu0 0.0
    %154 = vmatprep.subr.mxu0 0.0
    %155 = vmatpush1.msra.mxu0 0.0
    %156 = vmatprep.subr.mxu0 0.0
    %157 = vmatpush1.msra.mxu0 0.0
    %158 = vmatprep.subr.mxu0 0.0
    %159 = vmatpush1.msra.mxu0 0.0
    %160 = vmatprep.subr.mxu0 0.0
    %161 = vmatpush1.msra.mxu0 0.0
    %162 = vmatprep.subr.mxu0 0.0
    %163 = vmatpush1.msra.mxu0 0.0
    %164 = vmatprep.subr.mxu0 0.0
    %165 = vmatpush1.msra.mxu0 0.0
    %166 = vmatprep.subr.mxu0 0.0
    %167 = vmatpush1.msra.mxu0 0.0
    %168 = vmatprep.subr.mxu0 0.0
    %169 = vmatpush1.msra.mxu0 0.0
    %170 = vmatprep.subr.mxu0 0.0
    %171 = vmatpush1.msra.mxu0 0.0
    %172 = vmatprep.subr.mxu0 0.0
    %173 = vmatpush1.msra.mxu0 0.0
    %174 = vmatprep.subr.mxu0 0.0
    %175 = vmatpush1.msra.mxu0 0.0
    %176 = vmatprep.subr.mxu0 0.0
    %177 = vmatpush1.msra.mxu0 0.0
    %178 = vmatprep.subr.mxu0 0.0
    %179 = vmatpush1.msra.mxu0 0.0
    %180 = vmatprep.subr.mxu0 0.0
    %181 = vmatpush1.msra.mxu0 0.0
    %182 = vmatprep.subr.mxu0 0.0
    %183 = vmatpush1.msra.mxu0 0.0
    %184 = vmatprep.subr.mxu0 0.0
    %185 = vmatpush1.msra.mxu0 0.0
    %186 = vmatprep.subr.mxu0 0.0
    %187 = vmatpush1.msra.mxu0 0.0
    %188 = vmatprep.mubr.f32.mxu0 0.0
    %189 = vmatmul.mubr.f32.gmra.mrb[0].mxu0 %v119
    %v190 = vpop.f32.mrb[0].mxu0
    %v191 = vadd.f32 0.0, %v190
    %v192 = vpop.f32.mrb[0].mxu0
    %193 = vmatprep.mubr.f32.mxu0 0.0
    %194 = vmatmul.mubr.f32.gmra.mrb[0].mxu0 %v122
    %v195 = vpop.f32.mrb[0].mxu0
    %v196 = vadd.f32 0.0, %v195
    %v197 = vpop.f32.mrb[0].mxu0
    %198 = vdwg.mxu0
    %199 = vst [vmem:[#allocation5] sm:$0xff] %v191
    %200 = vst [vmem:[#allocation5 + $0x8] sm:$0xff] %v196
    // Predicated region
    $region14: #{tpu_custom_call.1} parent=1 // pred_check
      _
    $region15: #{tpu_custom_call.1} parent=1 // pred_check_branch
      %202 = sbr.rel (0) target = $region17
    $region16: #{tpu_custom_call.1} parent=1 // pred_region
      %s204 = ssub.s32 256, 256
      %205 = vsyncadd [#allocation4], %s204
      %s206 = sshll.u32 [#allocation5], 4
      %s207 = int_to_ptr.vmem [resolvable:$true] %s206
      %212 = dma.vmem_to_hbm [thread:$0]  %s207, 256, %s2, [#allocation4], 128, 128, 8
    $region17: #{tpu_custom_call.1} parent=1 // pred_fallthru
      _
    // Predicated region
    $region18: #{tpu_custom_call.1} parent=1 // pred_check
      _
    $region19: #{tpu_custom_call.1} parent=1 // pred_check_branch
      %214 = sbr.rel (0) target = $region21
    $region20: #{tpu_custom_call.1} parent=1 // pred_region
      %215 = dma.done [#allocation4], 256
    $region21: #{tpu_custom_call.1} parent=1 // pred_fallthru
      _
    %216 = vsyncpa [#allocation3], 1
    %217 = vsyncpa [#allocation4], 1

</llo_original>
